<compile_context>
chip_gen: v7x
topology: tpu7x:2x2x1
jax: 0.10.0
libtpu: 0.0.40
codegen_flags: <defaults>
</compile_context>

<pallas_src>
import math
import functools

import jax
import jax.numpy as jnp
from jax import lax
from jax.experimental import pallas as pl
from jax.experimental.pallas import tpu as pltpu

_SQRT_HALF = 1.0 / math.sqrt(2.0)


def _round_up(a, b):
    return ((a + b - 1) // b) * b


@functools.lru_cache(maxsize=None)
def _vmem_capacity_bytes():
    """Physical per-core VMEM bytes (128 MiB on v5e/v6e, 64 MiB on v7x)."""
    try:
        return int(pltpu.get_tpu_info().vmem_capacity_bytes)
    except Exception:
        pass
    try:
        kind = jax.devices()[0].device_kind.lower()
        if "v7" in kind:
            return 64 * 1024 * 1024
        return 128 * 1024 * 1024
    except Exception:
        return 64 * 1024 * 1024


def _vmem_limit_and_budget():
    cap = _vmem_capacity_bytes()
    vmem_limit = int(cap * 0.75)            # ≈96 MiB on 128 MiB chips, ≈48 MiB on v7x
    tile_budget = vmem_limit - (4 << 20)    # headroom for compiler internal scratch
    return vmem_limit, tile_budget


def _gelu_exact_f32(h):
    # Exact erf formulation — matches torch.nn.GELU() default.
    return 0.5 * h * (1.0 + lax.erf(h * _SQRT_HALF))


# ----------------------------------------------------------------------------
# Kernels
# ----------------------------------------------------------------------------

def _mlp_kernel_resident(x_ref, w1_ref, w2_ref, o_ref):
    # Weight-resident path: full (padded) F held in VMEM, 1-D grid over token
    # tiles, weights fetched once per call (constant block index). No scratch.
    h = jnp.dot(x_ref[...], w1_ref[...], preferred_element_type=jnp.float32)
    h = _gelu_exact_f32(h)
    o_ref[...] = jnp.dot(h.astype(w2_ref.dtype), w2_ref[...],
                         preferred_element_type=jnp.float32).astype(o_ref.dtype)


def _mlp_kernel_tiled(x_ref, w1_ref, w2_ref, o_ref, acc_ref):
    # F-tiled path: grid = (M_tiles, F_tiles); F is the reduction axis of the
    # second matmul, accumulated in an f32 VMEM scratch resident across k.
    k = pl.program_id(1)

    h = jnp.dot(x_ref[...], w1_ref[...], preferred_element_type=jnp.float32)
    h = _gelu_exact_f32(h)
    p = jnp.dot(h.astype(w2_ref.dtype), w2_ref[...],
                preferred_element_type=jnp.float32)

    @pl.when(k == 0)
    def _():
        acc_ref[...] = p

    @pl.when(k > 0)
    def _():
        acc_ref[...] += p

    @pl.when(k == pl.num_programs(1) - 1)
    def _():
        o_ref[...] = acc_ref[...].astype(o_ref.dtype)


# ----------------------------------------------------------------------------
# Wrapper
# ----------------------------------------------------------------------------

def prepare_mlp_weights(w1, w2, *, force_tf=None):
    """One-time weight prep (call at weight-load time, NOT per forward).

    w1: torch Linear1 weight (F, D); w2: torch Linear2 weight (D, F).
    Returns (w1_t, w2_t, tf): weights transposed to (in, out) layout, F
    zero-padded to a multiple of tf; tf is a static Python int hidden-dim tile.
    F zero-padding is exact (GELU(0)=0 and the matching W2 rows are zero).
    """
    F, D = w1.shape
    assert w2.shape == (D, F), "w2 must be (model_dims, ff_dims)"
    w_item = jnp.dtype(w1.dtype).itemsize
    _, tile_budget = _vmem_limit_and_budget()

    F_pad128 = _round_up(F, 128)
    if force_tf is not None:
        tf = int(force_tf)
    else:
        # Resident if both (double-buffered) weight matrices fit in ~half the budget.
        resident_bytes = 2 * 2 * D * F_pad128 * w_item
        tf = F_pad128 if resident_bytes <= tile_budget // 2 else min(512, F_pad128)

    F_pad = _round_up(F, tf)
    w1_t = jnp.asarray(w1).T          # (D, F)
    w2_t = jnp.asarray(w2).T          # (F, D)
    if F_pad != F:
        w1_t = jnp.pad(w1_t, ((0, 0), (0, F_pad - F)))
        w2_t = jnp.pad(w2_t, ((0, F_pad - F), (0, 0)))
    return w1_t, w2_t, tf


def _pick_tm(M, D, x_item, out_item, w_item, tf, resident, tile_budget, sublane):
    """Largest token tile whose double-buffered working set fits the VMEM budget."""
    m_cap = _round_up(max(M, 1), sublane)
    w_slice = 2 * 2 * D * tf * w_item            # W1^T + W2^T slices, double-buffered
    for c in (1024, 512, 384, 256, 128, 64, 32, 16, 8):
        t = min(c, m_cap)
        if t % sublane:
            continue
        act = 2 * t * D * x_item + 2 * t * D * out_item   # x + out, double-buffered
        acc = 0 if resident else t * D * 4                # f32 accumulator scratch
        if act + acc + w_slice <= tile_budget:
            return t
    return sublane


@functools.partial(jax.jit, static_argnames=("tf",))
def mlp_pallas(x, w1_t, w2_t, *, tf):
    """x: (..., D); w1_t: (D, F_pad); w2_t: (F_pad, D) from prepare_mlp_weights."""
    orig_shape = x.shape
    D = orig_shape[-1]
    F_pad = w1_t.shape[1]
    assert F_pad % tf == 0

    x2d = x.reshape(-1, D)
    M = x2d.shape[0]

    x_item = jnp.dtype(x.dtype).itemsize
    out_item = x_item
    w_item = jnp.dtype(w1_t.dtype).itemsize
    sublane = {4: 8, 2: 16, 1: 32}.get(x_item, 8)

    vmem_limit, tile_budget = _vmem_limit_and_budget()
    resident = (tf == F_pad)

    tm = _pick_tm(M, D, x_item, out_item, w_item, tf, resident, tile_budget, sublane)
    M_pad = _round_up(M, tm)
    if M_pad != M:
        x2d = jnp.pad(x2d, ((0, M_pad - M), (0, 0)))

    n_mt = M_pad // tm
    n_ft = F_pad // tf

    # Advisory cost: weights are read once (resident) or once per M tile (tiled).
    w_bytes = 2 * D * F_pad * w_item
    w_reads = 1 if resident else n_mt
    cost = pl.CostEstimate(
        flops=2 * 2 * M_pad * F_pad * D,
        transcendentals=M_pad * F_pad,
        bytes_accessed=M_pad * D * (x_item + out_item) + w_reads * w_bytes,
    )

    if resident:
        out = pl.pallas_call(
            _mlp_kernel_resident,
            out_shape=jax.ShapeDtypeStruct((M_pad, D), x.dtype),
            grid_spec=pltpu.PrefetchScalarGridSpec(
                num_scalar_prefetch=0,
                grid=(n_mt,),
                in_specs=[
                    pl.BlockSpec((tm, D), lambda i: (i, 0)),       # x row tile
                    pl.BlockSpec((D, F_pad), lambda i: (0, 0)),    # W1^T (resident)
                    pl.BlockSpec((F_pad, D), lambda i: (0, 0)),    # W2^T (resident)
                ],
                out_specs=pl.BlockSpec((tm, D), lambda i: (i, 0)),
            ),
            compiler_params=pltpu.CompilerParams(
                dimension_semantics=("parallel",),
                vmem_limit_bytes=vmem_limit,
            ),
            cost_estimate=cost,
        )(x2d, w1_t, w2_t)
    else:
        out = pl.pallas_call(
            _mlp_kernel_tiled,
            out_shape=jax.ShapeDtypeStruct((M_pad, D), x.dtype),
            grid_spec=pltpu.PrefetchScalarGridSpec(
                num_scalar_prefetch=0,
                grid=(n_mt, n_ft),
                in_specs=[
                    pl.BlockSpec((tm, D), lambda i, k: (i, 0)),    # x row tile
                    pl.BlockSpec((D, tf), lambda i, k: (0, k)),    # W1^T F-slice
                    pl.BlockSpec((tf, D), lambda i, k: (k, 0)),    # W2^T F-slice
                ],
                out_specs=pl.BlockSpec((tm, D), lambda i, k: (i, 0)),
                scratch_shapes=[pltpu.VMEM((tm, D), jnp.float32)],
            ),
            compiler_params=pltpu.CompilerParams(
                dimension_semantics=("parallel", "arbitrary"),
                vmem_limit_bytes=vmem_limit,
            ),
            cost_estimate=cost,
        )(x2d, w1_t, w2_t)

    if M_pad != M:
        out = out[:M]
    return out.reshape(orig_shape)


def _reference(x, w1, w2):
    h = x.astype(jnp.float32) @ w1.T.astype(jnp.float32)
    h = 0.5 * h * (1.0 + lax.erf(h / jnp.sqrt(2.0)))
    return (h @ w2.T.astype(jnp.float32)).astype(x.dtype)


if __name__ == "__main__":
    # Small shapes consistent with the module: batch=2, seq=8, model_dims=32.
    batch, seq, model_dims = 2, 8, 32
    ff_dims = model_dims * 4  # default ff_dims = 4 * model_dims

    key = jax.random.PRNGKey(0)
    kx, k1, k2, k3, k4 = jax.random.split(key, 5)

    x = jax.random.normal(kx, (batch, seq, model_dims), dtype=jnp.float32)
    # nn.Linear weight shapes: (out_features, in_features), no bias.
    w1 = jax.random.normal(k1, (ff_dims, model_dims), dtype=jnp.float32) * 0.02
    w2 = jax.random.normal(k2, (model_dims, ff_dims), dtype=jnp.float32) * 0.02

    # 1) Weight-resident fast path (weights fit comfortably in VMEM).
    w1_t, w2_t, tf = prepare_mlp_weights(w1, w2)
    out = jax.block_until_ready(mlp_pallas(x, w1_t, w2_t, tf=tf))
    ref = _reference(x, w1, w2)
    assert out.shape == (batch, seq, model_dims)
    assert jnp.allclose(out, ref, atol=1e-5, rtol=1e-5), "mismatch (resident path)"

    # 2) Also exercise the F-tiled / accumulating path by forcing a small tf.
    ff_big = 256
    w1b = jax.random.normal(k3, (ff_big, model_dims), dtype=jnp.float32) * 0.02
    w2b = jax.random.normal(k4, (model_dims, ff_big), dtype=jnp.float32) * 0.02
    w1b_t, w2b_t, tfb = prepare_mlp_weights(w1b, w2b, force_tf=128)
    outb = jax.block_until_ready(mlp_pallas(x, w1b_t, w2b_t, tf=tfb))
    refb = _reference(x, w1b, w2b)
    assert jnp.allclose(outb, refb, atol=1e-5, rtol=1e-5), "mismatch (tiled path)"

    print("KERNEL_OK")
</pallas_src>

<mosaic_0001>
module attributes {stable_mosaic.version = 11 : i64} {
  func.func @_mlp_kernel_resident(%arg0: i32, %arg1: memref<16x32xf32, #tpu.memory_space<vmem>>, %arg2: memref<32x128xf32, #tpu.memory_space<vmem>>, %arg3: memref<128x32xf32, #tpu.memory_space<vmem>>, %arg4: memref<16x32xf32, #tpu.memory_space<vmem>>) attributes {dimension_semantics = [#tpu.dimension_semantics<parallel>], iteration_bounds = array<i64: 1>, scalar_prefetch = 0 : i64, scratch_operands = 0 : i64, tpu.core_type = #tpu.core_type<tc>, window_params = [{transform_indices = @transform_0, window_bounds = array<i64: 16, 32>}, {pipeline_mode = #tpu.pipeline_mode<synchronous>, transform_indices = @transform_1, window_bounds = array<i64: 32, 128>}, {pipeline_mode = #tpu.pipeline_mode<synchronous>, transform_indices = @transform_2, window_bounds = array<i64: 128, 32>}, {transform_indices = @transform_3, window_bounds = array<i64: 16, 32>}]} {
    %c0 = arith.constant 0 : index
    %c0_0 = arith.constant 0 : index
    %0 = vector.load %arg1[%c0, %c0_0] : memref<16x32xf32, #tpu.memory_space<vmem>>, vector<16x32xf32>
    %c0_1 = arith.constant 0 : index
    %c0_2 = arith.constant 0 : index
    %1 = vector.load %arg2[%c0_1, %c0_2] : memref<32x128xf32, #tpu.memory_space<vmem>>, vector<32x128xf32>
    %cst = arith.constant dense<0.000000e+00> : vector<16x128xf32>
    %2 = tpu.matmul %0, %1, %cst {dimension_numbers = #tpu.dot_dimension_numbers<[1], [0], [0], [1], [0, 0, 1, 1], [], []>} : vector<16x32xf32>, vector<32x128xf32>, vector<16x128xf32> -> vector<16x128xf32>
    %cst_3 = arith.constant 5.000000e-01 : f32
    %3 = vector.broadcast %cst_3 : f32 to vector<16x128xf32>
    %4 = arith.mulf %3, %2 : vector<16x128xf32>
    %cst_4 = arith.constant 0.707106769 : f32
    %5 = vector.broadcast %cst_4 : f32 to vector<16x128xf32>
    %6 = arith.mulf %2, %5 : vector<16x128xf32>
    %7 = math.erf %6 : vector<16x128xf32>
    %cst_5 = arith.constant 1.000000e+00 : f32
    %8 = vector.broadcast %cst_5 : f32 to vector<16x128xf32>
    %9 = arith.addf %8, %7 : vector<16x128xf32>
    %10 = arith.mulf %4, %9 : vector<16x128xf32>
    %c0_6 = arith.constant 0 : index
    %c0_7 = arith.constant 0 : index
    %11 = vector.load %arg3[%c0_6, %c0_7] : memref<128x32xf32, #tpu.memory_space<vmem>>, vector<128x32xf32>
    %cst_8 = arith.constant dense<0.000000e+00> : vector<16x32xf32>
    %12 = tpu.matmul %10, %11, %cst_8 {dimension_numbers = #tpu.dot_dimension_numbers<[1], [0], [0], [1], [0, 0, 1, 1], [], []>} : vector<16x128xf32>, vector<128x32xf32>, vector<16x32xf32> -> vector<16x32xf32>
    %c0_9 = arith.constant 0 : index
    %c0_10 = arith.constant 0 : index
    %13 = vector.load %arg4[%c0_9, %c0_10] : memref<16x32xf32, #tpu.memory_space<vmem>>, vector<16x32xf32>
    tpu.vector_store %arg4[%c0_9, %c0_10], %12 {strides = array<i32>} : memref<16x32xf32, #tpu.memory_space<vmem>>, vector<16x32xf32>,
    return
  }
  func.func @transform_0(%arg0: i32) -> (i32, i32) {
    %c0_i32 = arith.constant 0 : i32
    %c0_i32_0 = arith.constant 0 : i32
    return %arg0, %c0_i32 : i32, i32
  }
  func.func @transform_1(%arg0: i32) -> (i32, i32) {
    %c0_i32 = arith.constant 0 : i32
    %c0_i32_0 = arith.constant 0 : i32
    %c0_i32_1 = arith.constant 0 : i32
    return %c0_i32, %c0_i32_0 : i32, i32
  }
  func.func @transform_2(%arg0: i32) -> (i32, i32) {
    %c0_i32 = arith.constant 0 : i32
    %c0_i32_0 = arith.constant 0 : i32
    %c0_i32_1 = arith.constant 0 : i32
    return %c0_i32, %c0_i32_0 : i32, i32
  }
  func.func @transform_3(%arg0: i32) -> (i32, i32) {
    %c0_i32 = arith.constant 0 : i32
    %c0_i32_0 = arith.constant 0 : i32
    return %arg0, %c0_i32 : i32, i32
  }
}

</mosaic_0001>

<llo_original>
// kernel: mlp_pallas.1
$region0: #{mlp_pallas.1}
  #allocation0 [shape = 'u32[]', space=smem, size = 0x4, offset = 0x4, fixed_abs, tag = 'smem constant byte address 0x4 - core index']
  #allocation1 [shape = 'u32[144,128]{1,0:T(1,128)}', space=vmem, size = 0x12000, scoped, tag = 'internal scratch']
  %s0 = inlined_call_operand.hbm [shape: f32[16,32], index: 0, kind: input, shape index: {}]
  %s1 = inlined_call_operand.hbm [shape: f32[32,128], index: 1, kind: input, shape index: {}]
  %s2 = inlined_call_operand.hbm [shape: f32[128,32], index: 2, kind: input, shape index: {}]
  %s3 = inlined_call_operand.hbm [shape: f32[16,32], index: 3, kind: output, shape index: {}]
  %s4 = sld [smem:[#allocation0]]
  $region34: #{mlp_pallas.1} parent=0
    _
  %s6 = ssub.s32 1, %s4
  %s7 = scalar_select 0, %s6, %s4
  $region1: #{mlp_pallas.1} parent=0
    #allocation2 [shape = 'u8[8192]{0}', space=vmem, size = 0x2000, scoped, tag = 'input window, operand 0, single buffered']
    #allocation3 [shape = 's32[1]{0}', space=sflag, size = 0x4, scoped, tag = 'scoped memory for mlp_pallas.1']
    #allocation4 [shape = 's32[1]{0}', space=sflag, size = 0x4, scoped, tag = 'scoped memory for mlp_pallas.1']
    #allocation5 [shape = 'u8[16384]{0}', space=vmem, size = 0x4000, scoped, tag = 'input window, operand 1, single buffered']
    #allocation6 [shape = 's32[1]{0}', space=sflag, size = 0x4, scoped, tag = 'scoped memory for mlp_pallas.1']
    #allocation7 [shape = 'u8[65536]{0}', space=vmem, size = 0x10000, scoped, tag = 'input window, operand 2, single buffered']
    #allocation8 [shape = 'u8[8192]{0}', space=vmem, size = 0x2000, scoped, tag = 'output window, operand 0, single buffered']
    %8 = vsyncpa [#allocation3], 0
    %9 = vsyncpa [#allocation6], 0
    %10 = vsyncpa [#allocation4], 0
    // Predicated region
    $region2: #{mlp_pallas.1} parent=1 // pred_check
      _
    $region3: #{mlp_pallas.1} parent=1 // pred_check_branch
      %12 = sbr.rel (0) target = $region5
    $region4: #{mlp_pallas.1} parent=1 // pred_region
      %s14 = ssub.s32 256, 256
      %15 = vsyncadd [#allocation3], %s14
      %s16 = sshll.u32 [#allocation2], 4
      %s17 = int_to_ptr.vmem [resolvable:$true] %s16
      %22 = dma.hbm_to_vmem [thread:$0]  %s0, 256, %s17, [#allocation3], 128, 128, 8
    $region5: #{mlp_pallas.1} parent=1 // pred_fallthru
      _
    // Predicated region
    $region6: #{mlp_pallas.1} parent=1 // pred_check
      _
    $region7: #{mlp_pallas.1} parent=1 // pred_check_branch
      %24 = sbr.rel (0) target = $region9
    $region8: #{mlp_pallas.1} parent=1 // pred_region
      %s26 = ssub.s32 512, 512
      %27 = vsyncadd [#allocation6], %s26
      %s28 = sshll.u32 [#allocation5], 4
      %s29 = int_to_ptr.vmem [resolvable:$true] %s28
      %34 = dma.hbm_to_vmem [thread:$0]  %s1, 512, %s29, [#allocation6], 128, 128, 8
    $region9: #{mlp_pallas.1} parent=1 // pred_fallthru
      _
    // Predicated region
    $region10: #{mlp_pallas.1} parent=1 // pred_check
      _
    $region11: #{mlp_pallas.1} parent=1 // pred_check_branch
      %36 = sbr.rel (0) target = $region13
    $region12: #{mlp_pallas.1} parent=1 // pred_region
      %s38 = ssub.s32 2048, 2048
      %39 = vsyncadd [#allocation6], %s38
      %s40 = sshll.u32 [#allocation7], 4
      %s41 = int_to_ptr.vmem [resolvable:$true] %s40
      %46 = dma.hbm_to_vmem [thread:$0]  %s2, 2048, %s41, [#allocation6], 128, 128, 8
    $region13: #{mlp_pallas.1} parent=1 // pred_fallthru
      _
    // Predicated region
    $region14: #{mlp_pallas.1} parent=1 // pred_check
      _
    $region15: #{mlp_pallas.1} parent=1 // pred_check_branch
      %48 = sbr.rel (0) target = $region17
    $region16: #{mlp_pallas.1} parent=1 // pred_region
      %49 = dma.done [#allocation3], 256
    $region17: #{mlp_pallas.1} parent=1 // pred_fallthru
      _
    // Predicated region
    $region18: #{mlp_pallas.1} parent=1 // pred_check
      _
    $region19: #{mlp_pallas.1} parent=1 // pred_check_branch
      %51 = sbr.rel (0) target = $region21
    $region20: #{mlp_pallas.1} parent=1 // pred_region
      %52 = dma.done [#allocation6], 512
    $region21: #{mlp_pallas.1} parent=1 // pred_fallthru
      _
    // Predicated region
    $region22: #{mlp_pallas.1} parent=1 // pred_check
      _
    $region23: #{mlp_pallas.1} parent=1 // pred_check_branch
      %54 = sbr.rel (0) target = $region25
    $region24: #{mlp_pallas.1} parent=1 // pred_region
      %55 = dma.done [#allocation6], 2048
    $region25: #{mlp_pallas.1} parent=1 // pred_fallthru
      _
    %v56 = vld [vmem:[#allocation2] sm:$0xff]
    %v57 = vld [vmem:[#allocation2 + $0x8] sm:$0xff]
    %v58 = vld [vmem:[#allocation5] sm:$0xff]
    %v59 = vld [vmem:[#allocation5 + $0x8] sm:$0xff]
    %v60 = vld [vmem:[#allocation5 + $0x10] sm:$0xff]
    %v61 = vld [vmem:[#allocation5 + $0x18] sm:$0xff]
    %vm62 = vcmask 261120
    %v64 = vsel %vm62, %v56, 0
    %v67 = vsel %vm62, %v57, 0
    %69 = vmatprep.subr.mxu0 0.0
    %70 = vmatpush1.msra.mxu0 %v58
    %71 = vmatprep.subr.mxu0 0.0
    %72 = vmatpush1.msra.mxu0 %v59
    %73 = vmatprep.subr.mxu0 0.0
    %74 = vmatpush1.msra.mxu0 %v60
    %75 = vmatprep.subr.mxu0 0.0
    %76 = vmatpush1.msra.mxu0 %v61
    %77 = vmatprep.subr.mxu0 0.0
    %78 = vmatpush1.msra.mxu0 0.0
    %79 = vmatprep.subr.mxu0 0.0
    %80 = vmatpush1.msra.mxu0 0.0
    %81 = vmatprep.subr.mxu0 0.0
    %82 = vmatpush1.msra.mxu0 0.0
    %83 = vmatprep.subr.mxu0 0.0
    %84 = vmatpush1.msra.mxu0 0.0
    %85 = vmatprep.subr.mxu0 0.0
    %86 = vmatpush1.msra.mxu0 0.0
    %87 = vmatprep.subr.mxu0 0.0
    %88 = vmatpush1.msra.mxu0 0.0
    %89 = vmatprep.subr.mxu0 0.0
    %90 = vmatpush1.msra.mxu0 0.0
    %91 = vmatprep.subr.mxu0 0.0
    %92 = vmatpush1.msra.mxu0 0.0
    %93 = vmatprep.subr.mxu0 0.0
    %94 = vmatpush1.msra.mxu0 0.0
    %95 = vmatprep.subr.mxu0 0.0
    %96 = vmatpush1.msra.mxu0 0.0
    %97 = vmatprep.subr.mxu0 0.0
    %98 = vmatpush1.msra.mxu0 0.0
    %99 = vmatprep.subr.mxu0 0.0
    %100 = vmatpush1.msra.mxu0 0.0
    %101 = vmatprep.subr.mxu0 0.0
    %102 = vmatpush1.msra.mxu0 0.0
    %103 = vmatprep.subr.mxu0 0.0
    %104 = vmatpush1.msra.mxu0 0.0
    %105 = vmatprep.subr.mxu0 0.0
    %106 = vmatpush1.msra.mxu0 0.0
    %107 = vmatprep.subr.mxu0 0.0
    %108 = vmatpush1.msra.mxu0 0.0
    %109 = vmatprep.subr.mxu0 0.0
    %110 = vmatpush1.msra.mxu0 0.0
    %111 = vmatprep.subr.mxu0 0.0
    %112 = vmatpush1.msra.mxu0 0.0
    %113 = vmatprep.subr.mxu0 0.0
    %114 = vmatpush1.msra.mxu0 0.0
    %115 = vmatprep.subr.mxu0 0.0
    %116 = vmatpush1.msra.mxu0 0.0
    %117 = vmatprep.subr.mxu0 0.0
    %118 = vmatpush1.msra.mxu0 0.0
    %119 = vmatprep.subr.mxu0 0.0
    %120 = vmatpush1.msra.mxu0 0.0
    %121 = vmatprep.subr.mxu0 0.0
    %122 = vmatpush1.msra.mxu0 0.0
    %123 = vmatprep.subr.mxu0 0.0
    %124 = vmatpush1.msra.mxu0 0.0
    %125 = vmatprep.subr.mxu0 0.0
    %126 = vmatpush1.msra.mxu0 0.0
    %127 = vmatprep.subr.mxu0 0.0
    %128 = vmatpush1.msra.mxu0 0.0
    %129 = vmatprep.subr.mxu0 0.0
    %130 = vmatpush1.msra.mxu0 0.0
    %131 = vmatprep.subr.mxu0 0.0
    %132 = vmatpush1.msra.mxu0 0.0
    %133 = vmatprep.mubr.f32.mxu0 0.0
    %134 = vmatmul.mubr.f32.gmra.mrb[0].mxu0 %v64
    %v135 = vpop.f32.mrb[0].mxu0
    %v136 = vadd.f32 0.0, %v135
    %v137 = vpop.f32.mrb[0].mxu0
    %138 = vmatprep.mubr.f32.mxu0 0.0
    %139 = vmatmul.mubr.f32.gmra.mrb[0].mxu0 %v67
    %v140 = vpop.f32.mrb[0].mxu0
    %v141 = vadd.f32 0.0, %v140
    %v142 = vpop.f32.mrb[0].mxu0
    %143 = vdwg.mxu0
    %v144 = vmul.f32 %v136, 0.5
    %v145 = vmul.f32 %v141, 0.5
    %v146 = vmul.f32 %v136, 0.70710677
    %v147 = vmul.f32 %v141, 0.70710677
    %v148 = verf.f32.pop %v146
    %v149 = verf.f32.pop %v147
    %v150 = vadd.f32 %v148, 1.0
    %v151 = vadd.f32 %v149, 1.0
    %v152 = vmul.f32 %v144, %v150
    %v153 = vmul.f32 %v145, %v151
    %v154 = vld [vmem:[#allocation7] sm:$0xff]
    %v155 = vld [vmem:[#allocation7 + $0x8] sm:$0xff]
    %v156 = vld [vmem:[#allocation7 + $0x10] sm:$0xff]
    %v157 = vld [vmem:[#allocation7 + $0x18] sm:$0xff]
    %v158 = vld [vmem:[#allocation7 + $0x20] sm:$0xff]
    %v159 = vld [vmem:[#allocation7 + $0x28] sm:$0xff]
    %v160 = vld [vmem:[#allocation7 + $0x30] sm:$0xff]
    %v161 = vld [vmem:[#allocation7 + $0x38] sm:$0xff]
    %v162 = vld [vmem:[#allocation7 + $0x40] sm:$0xff]
    %v163 = vld [vmem:[#allocation7 + $0x48] sm:$0xff]
    %v164 = vld [vmem:[#allocation7 + $0x50] sm:$0xff]
    %v165 = vld [vmem:[#allocation7 + $0x58] sm:$0xff]
    %v166 = vld [vmem:[#allocation7 + $0x60] sm:$0xff]
    %v167 = vld [vmem:[#allocation7 + $0x68] sm:$0xff]
    %v168 = vld [vmem:[#allocation7 + $0x70] sm:$0xff]
    %v169 = vld [vmem:[#allocation7 + $0x78] sm:$0xff]
    %170 = vmatprep.subr.mxu0 0.0
    %171 = vmatpush1.msra.mxu0 %v154
    %172 = vmatprep.subr.mxu0 0.0
    %173 = vmatpush1.msra.mxu0 %v155
    %174 = vmatprep.subr.mxu0 0.0
    %175 = vmatpush1.msra.mxu0 %v156
    %176 = vmatprep.subr.mxu0 0.0
    %177 = vmatpush1.msra.mxu0 %v157
    %178 = vmatprep.subr.mxu0 0.0
    %179 = vmatpush1.msra.mxu0 %v158
    %180 = vmatprep.subr.mxu0 0.0
    %181 = vmatpush1.msra.mxu0 %v159
    %182 = vmatprep.subr.mxu0 0.0
    %183 = vmatpush1.msra.mxu0 %v160
    %184 = vmatprep.subr.mxu0 0.0
    %185 = vmatpush1.msra.mxu0 %v161
    %186 = vmatprep.subr.mxu0 0.0
    %187 = vmatpush1.msra.mxu0 %v162
    %188 = vmatprep.subr.mxu0 0.0
    %189 = vmatpush1.msra.mxu0 %v163
    %190 = vmatprep.subr.mxu0 0.0
    %191 = vmatpush1.msra.mxu0 %v164
    %192 = vmatprep.subr.mxu0 0.0
    %193 = vmatpush1.msra.mxu0 %v165
    %194 = vmatprep.subr.mxu0 0.0
    %195 = vmatpush1.msra.mxu0 %v166
    %196 = vmatprep.subr.mxu0 0.0
    %197 = vmatpush1.msra.mxu0 %v167
    %198 = vmatprep.subr.mxu0 0.0
    %199 = vmatpush1.msra.mxu0 %v168
    %200 = vmatprep.subr.mxu0 0.0
    %201 = vmatpush1.msra.mxu0 %v169
    %202 = vmatprep.subr.mxu0 0.0
    %203 = vmatpush1.msra.mxu0 0.0
    %204 = vmatprep.subr.mxu0 0.0
    %205 = vmatpush1.msra.mxu0 0.0
    %206 = vmatprep.subr.mxu0 0.0
    %207 = vmatpush1.msra.mxu0 0.0
    %208 = vmatprep.subr.mxu0 0.0
    %209 = vmatpush1.msra.mxu0 0.0
    %210 = vmatprep.subr.mxu0 0.0
    %211 = vmatpush1.msra.mxu0 0.0
    %212 = vmatprep.subr.mxu0 0.0
    %213 = vmatpush1.msra.mxu0 0.0
    %214 = vmatprep.subr.mxu0 0.0
    %215 = vmatpush1.msra.mxu0 0.0
    %216 = vmatprep.subr.mxu0 0.0
    %217 = vmatpush1.msra.mxu0 0.0
    %218 = vmatprep.subr.mxu0 0.0
    %219 = vmatpush1.msra.mxu0 0.0
    %220 = vmatprep.subr.mxu0 0.0
    %221 = vmatpush1.msra.mxu0 0.0
    %222 = vmatprep.subr.mxu0 0.0
    %223 = vmatpush1.msra.mxu0 0.0
    %224 = vmatprep.subr.mxu0 0.0
    %225 = vmatpush1.msra.mxu0 0.0
    %226 = vmatprep.subr.mxu0 0.0
    %227 = vmatpush1.msra.mxu0 0.0
    %228 = vmatprep.subr.mxu0 0.0
    %229 = vmatpush1.msra.mxu0 0.0
    %230 = vmatprep.subr.mxu0 0.0
    %231 = vmatpush1.msra.mxu0 0.0
    %232 = vmatprep.subr.mxu0 0.0
    %233 = vmatpush1.msra.mxu0 0.0
    %234 = vmatprep.mubr.f32.mxu0 0.0
    %235 = vmatmul.mubr.f32.gmra.mrb[0].mxu0 %v152
    %v236 = vpop.f32.mrb[0].mxu0
    %v237 = vadd.f32 0.0, %v236
    %v238 = vpop.f32.mrb[0].mxu0
    %239 = vmatprep.mubr.f32.mxu0 0.0
    %240 = vmatmul.mubr.f32.gmra.mrb[0].mxu0 %v153
    %v241 = vpop.f32.mrb[0].mxu0
    %v242 = vadd.f32 0.0, %v241
    %v243 = vpop.f32.mrb[0].mxu0
    %244 = vdwg.mxu0
    %245 = vst.msk [vmem:[#allocation8] sm:$0xff] %vm62, %v237
    %246 = vst.msk [vmem:[#allocation8 + $0x8] sm:$0xff] %vm62, %v242
    // Predicated region
    $region26: #{mlp_pallas.1} parent=1 // pred_check
      _
    $region27: #{mlp_pallas.1} parent=1 // pred_check_branch
      %248 = sbr.rel (0) target = $region29
    $region28: #{mlp_pallas.1} parent=1 // pred_region
      %s250 = ssub.s32 256, 256
      %251 = vsyncadd [#allocation4], %s250
      %s252 = sshll.u32 [#allocation8], 4
      %s253 = int_to_ptr.vmem [resolvable:$true] %s252
      %258 = dma.vmem_to_hbm [thread:$0]  %s253, 256, %s3, [#allocation4], 128, 128, 8
    $region29: #{mlp_pallas.1} parent=1 // pred_fallthru
      _
    // Predicated region
    $region30: #{mlp_pallas.1} parent=1 // pred_check
      _
    $region31: #{mlp_pallas.1} parent=1 // pred_check_branch
      %260 = sbr.rel (0) target = $region33
    $region32: #{mlp_pallas.1} parent=1 // pred_region
      %261 = dma.done [#allocation4], 256
    $region33: #{mlp_pallas.1} parent=1 // pred_fallthru
      _
    %262 = vsyncpa [#allocation3], 1
    %263 = vsyncpa [#allocation6], 1
    %264 = vsyncpa [#allocation4], 1

</llo_original>
